<compile_context>
chip_gen: v7x
topology: tpu7x:2x2x1
jax: 0.10.0
libtpu: 0.0.40
codegen_flags: <defaults>
</compile_context>

<pallas_src>
import math

import jax
import jax.numpy as jnp
from jax.experimental import pallas as pl
from jax.experimental.pallas import tpu as pltpu

# ----------------------------- config (cfg.*) --------------------------------
TEXT_DIM = 32      # cfg.TEXT.DIMENSION
COND_DIM = 16      # cfg.GAN.CONDITION_DIM

_ROW_TILE = 256    # max batch rows per grid step (one step for small batches)


def _round_up(x, m):
    return (x + m - 1) // m * m


# ----------------------------- Pallas kernel ---------------------------------
def _ca_net_kernel(x_ref, wmu_ref, wlv_ref, bmu_ref, blv_ref, eps_ref,
                   c_ref, mu_ref, lv_ref):
    """Fused: relu(x @ W + b) -> split mu/logvar -> c = eps*exp(0.5*logvar)+mu."""
    x = x_ref[...]
    mu = jnp.dot(x, wmu_ref[...], preferred_element_type=jnp.float32) + bmu_ref[...]
    lv = jnp.dot(x, wlv_ref[...], preferred_element_type=jnp.float32) + blv_ref[...]
    mu = jnp.maximum(mu, 0.0)          # ReLU applied to the fc output, then split
    lv = jnp.maximum(lv, 0.0)
    std = jnp.exp(0.5 * lv)            # EUP transcendental
    c_ref[...] = eps_ref[...] * std + mu
    mu_ref[...] = mu
    lv_ref[...] = lv


# ----------------------------- wrapper ---------------------------------------
def ca_net_forward(text_embedding, w, b, eps):
    """CA_NET forward pass.

    text_embedding: (B, TEXT_DIM) float32
    w:              (TEXT_DIM, 2*COND_DIM) float32  (input-major, i.e. torch weight.T)
    b:              (2*COND_DIM,) float32
    eps:            (B, COND_DIM) float32   N(0,1) sample of reparametrize

    Returns (c_code, mu, logvar), each (B, COND_DIM) float32.
    """
    B, T = text_embedding.shape
    C = COND_DIM

    # Host-side (zero-cost) split of the fc weight into mu / logvar halves.
    w_mu, w_lv = w[:, :C], w[:, C:]
    b_mu = b[:C].reshape(1, C).astype(jnp.float32)
    b_lv = b[C:].reshape(1, C).astype(jnp.float32)

    # Only the batch dim is padded, and only up to a sublane multiple of 8
    # (or the row tile for big batches).  No padded K/N slabs, no post-slice
    # of a 512x128 output.
    rows = min(_ROW_TILE, _round_up(B, 8))
    Mp = _round_up(B, rows)
    pad = Mp - B
    xp = jnp.pad(text_embedding.astype(jnp.float32), ((0, pad), (0, 0)))
    epsp = jnp.pad(eps.astype(jnp.float32), ((0, pad), (0, 0)))

    grid = (Mp // rows,)
    row_in_spec = pl.BlockSpec((rows, T), lambda i: (i, 0))   # text rows
    row_c_spec = pl.BlockSpec((rows, C), lambda i: (i, 0))    # eps / outputs
    full = lambda shp: pl.BlockSpec(shp, lambda i: (0, 0))    # weights / biases

    flops = 2 * Mp * T * (2 * C) + 8 * Mp * C
    bytes_accessed = 4 * (Mp * T + 2 * T * C + 2 * C + 4 * Mp * C)

    c_code, mu, logvar = pl.pallas_call(
        _ca_net_kernel,
        out_shape=(
            jax.ShapeDtypeStruct((Mp, C), jnp.float32),   # c_code
            jax.ShapeDtypeStruct((Mp, C), jnp.float32),   # mu
            jax.ShapeDtypeStruct((Mp, C), jnp.float32),   # logvar
        ),
        grid_spec=pltpu.PrefetchScalarGridSpec(
            num_scalar_prefetch=0,
            grid=grid,
            in_specs=[
                row_in_spec,        # text embedding rows
                full((T, C)),       # w_mu
                full((T, C)),       # w_logvar
                full((1, C)),       # b_mu
                full((1, C)),       # b_logvar
                row_c_spec,         # eps rows
            ],
            out_specs=[row_c_spec, row_c_spec, row_c_spec],
        ),
        compiler_params=pltpu.CompilerParams(
            dimension_semantics=("parallel",)),
        cost_estimate=pl.CostEstimate(
            flops=flops,
            transcendentals=Mp * C,
            bytes_accessed=bytes_accessed),
    )(xp, w_mu, w_lv, b_mu, b_lv, epsp)

    return c_code[:B], mu[:B], logvar[:B]


# ----------------------------- main -------------------------------------------
if __name__ == "__main__":
    key = jax.random.PRNGKey(0)
    k_w, k_b, k_text, k_eps = jax.random.split(key, 4)

    B = 2
    # nn.Linear(TEXT_DIM, 2*COND_DIM) default init: U(-1/sqrt(in), 1/sqrt(in))
    bound = 1.0 / math.sqrt(TEXT_DIM)
    w = jax.random.uniform(k_w, (TEXT_DIM, 2 * COND_DIM), jnp.float32,
                           -bound, bound)
    b = jax.random.uniform(k_b, (2 * COND_DIM,), jnp.float32, -bound, bound)
    text_embedding = jax.random.normal(k_text, (B, TEXT_DIM), jnp.float32)
    eps = jax.random.normal(k_eps, (B, COND_DIM), jnp.float32)   # reparam eps

    fwd = jax.jit(ca_net_forward)
    c_code, mu, logvar = fwd(text_embedding, w, b, eps)
    jax.block_until_ready(c_code)

    # pure-JAX reference (same math as the PyTorch module, eps made explicit)
    x_ref = jnp.maximum(text_embedding @ w + b, 0.0)
    mu_ref, lv_ref = x_ref[:, :COND_DIM], x_ref[:, COND_DIM:]
    c_ref = eps * jnp.exp(0.5 * lv_ref) + mu_ref

    assert c_code.shape == (B, COND_DIM)
    assert mu.shape == (B, COND_DIM) and logvar.shape == (B, COND_DIM)
    assert bool(jnp.all(jnp.isfinite(c_code)))
    assert bool(jnp.allclose(mu, mu_ref, atol=1e-5, rtol=1e-5))
    assert bool(jnp.allclose(logvar, lv_ref, atol=1e-5, rtol=1e-5))
    assert bool(jnp.allclose(c_code, c_ref, atol=1e-5, rtol=1e-5))

    print("KERNEL_OK")
</pallas_src>

<mosaic_0001>
module attributes {stable_mosaic.version = 11 : i64} {
  func.func @_ca_net_kernel(%arg0: i32, %arg1: memref<8x32xf32, #tpu.memory_space<vmem>>, %arg2: memref<32x16xf32, #tpu.memory_space<vmem>>, %arg3: memref<32x16xf32, #tpu.memory_space<vmem>>, %arg4: memref<1x16xf32, #tpu.memory_space<vmem>>, %arg5: memref<1x16xf32, #tpu.memory_space<vmem>>, %arg6: memref<8x16xf32, #tpu.memory_space<vmem>>, %arg7: memref<8x16xf32, #tpu.memory_space<vmem>>, %arg8: memref<8x16xf32, #tpu.memory_space<vmem>>, %arg9: memref<8x16xf32, #tpu.memory_space<vmem>>) attributes {dimension_semantics = [#tpu.dimension_semantics<parallel>], iteration_bounds = array<i64: 1>, scalar_prefetch = 0 : i64, scratch_operands = 0 : i64, tpu.core_type = #tpu.core_type<tc>, window_params = [{transform_indices = @transform_0, window_bounds = array<i64: 8, 32>}, {pipeline_mode = #tpu.pipeline_mode<synchronous>, transform_indices = @transform_1, window_bounds = array<i64: 32, 16>}, {pipeline_mode = #tpu.pipeline_mode<synchronous>, transform_indices = @transform_2, window_bounds = array<i64: 32, 16>}, {pipeline_mode = #tpu.pipeline_mode<synchronous>, transform_indices = @transform_3, window_bounds = array<i64: 1, 16>}, {pipeline_mode = #tpu.pipeline_mode<synchronous>, transform_indices = @transform_4, window_bounds = array<i64: 1, 16>}, {transform_indices = @transform_5, window_bounds = array<i64: 8, 16>}, {transform_indices = @transform_6, window_bounds = array<i64: 8, 16>}, {transform_indices = @transform_7, window_bounds = array<i64: 8, 16>}, {transform_indices = @transform_8, window_bounds = array<i64: 8, 16>}]} {
    %c0 = arith.constant 0 : index
    %c0_0 = arith.constant 0 : index
    %0 = vector.load %arg1[%c0, %c0_0] : memref<8x32xf32, #tpu.memory_space<vmem>>, vector<8x32xf32>
    %c0_1 = arith.constant 0 : index
    %c0_2 = arith.constant 0 : index
    %1 = vector.load %arg2[%c0_1, %c0_2] : memref<32x16xf32, #tpu.memory_space<vmem>>, vector<32x16xf32>
    %cst = arith.constant dense<0.000000e+00> : vector<8x16xf32>
    %2 = tpu.matmul %0, %1, %cst {dimension_numbers = #tpu.dot_dimension_numbers<[1], [0], [0], [1], [0, 0, 1, 1], [], []>} : vector<8x32xf32>, vector<32x16xf32>, vector<8x16xf32> -> vector<8x16xf32>
    %c0_3 = arith.constant 0 : index
    %c0_4 = arith.constant 0 : index
    %3 = vector.load %arg4[%c0_3, %c0_4] : memref<1x16xf32, #tpu.memory_space<vmem>>, vector<1x16xf32>
    %4 = vector.broadcast %3 : vector<1x16xf32> to vector<8x16xf32>
    %5 = arith.addf %2, %4 : vector<8x16xf32>
    %c0_5 = arith.constant 0 : index
    %c0_6 = arith.constant 0 : index
    %6 = vector.load %arg3[%c0_5, %c0_6] : memref<32x16xf32, #tpu.memory_space<vmem>>, vector<32x16xf32>
    %cst_7 = arith.constant dense<0.000000e+00> : vector<8x16xf32>
    %7 = tpu.matmul %0, %6, %cst_7 {dimension_numbers = #tpu.dot_dimension_numbers<[1], [0], [0], [1], [0, 0, 1, 1], [], []>} : vector<8x32xf32>, vector<32x16xf32>, vector<8x16xf32> -> vector<8x16xf32>
    %c0_8 = arith.constant 0 : index
    %c0_9 = arith.constant 0 : index
    %8 = vector.load %arg5[%c0_8, %c0_9] : memref<1x16xf32, #tpu.memory_space<vmem>>, vector<1x16xf32>
    %9 = vector.broadcast %8 : vector<1x16xf32> to vector<8x16xf32>
    %10 = arith.addf %7, %9 : vector<8x16xf32>
    %cst_10 = arith.constant 0.000000e+00 : f32
    %11 = vector.broadcast %cst_10 : f32 to vector<8x16xf32>
    %12 = arith.maximumf %5, %11 : vector<8x16xf32>
    %cst_11 = arith.constant 0.000000e+00 : f32
    %13 = vector.broadcast %cst_11 : f32 to vector<8x16xf32>
    %14 = arith.maximumf %10, %13 : vector<8x16xf32>
    %cst_12 = arith.constant 5.000000e-01 : f32
    %15 = vector.broadcast %cst_12 : f32 to vector<8x16xf32>
    %16 = arith.mulf %15, %14 : vector<8x16xf32>
    %17 = math.exp %16 : vector<8x16xf32>
    %c0_13 = arith.constant 0 : index
    %c0_14 = arith.constant 0 : index
    %18 = vector.load %arg6[%c0_13, %c0_14] : memref<8x16xf32, #tpu.memory_space<vmem>>, vector<8x16xf32>
    %19 = arith.mulf %18, %17 : vector<8x16xf32>
    %20 = arith.addf %19, %12 : vector<8x16xf32>
    %c0_15 = arith.constant 0 : index
    %c0_16 = arith.constant 0 : index
    %21 = vector.load %arg7[%c0_15, %c0_16] : memref<8x16xf32, #tpu.memory_space<vmem>>, vector<8x16xf32>
    tpu.vector_store %arg7[%c0_15, %c0_16], %20 {strides = array<i32>} : memref<8x16xf32, #tpu.memory_space<vmem>>, vector<8x16xf32>,
    %c0_17 = arith.constant 0 : index
    %c0_18 = arith.constant 0 : index
    %22 = vector.load %arg8[%c0_17, %c0_18] : memref<8x16xf32, #tpu.memory_space<vmem>>, vector<8x16xf32>
    tpu.vector_store %arg8[%c0_17, %c0_18], %12 {strides = array<i32>} : memref<8x16xf32, #tpu.memory_space<vmem>>, vector<8x16xf32>,
    %c0_19 = arith.constant 0 : index
    %c0_20 = arith.constant 0 : index
    %23 = vector.load %arg9[%c0_19, %c0_20] : memref<8x16xf32, #tpu.memory_space<vmem>>, vector<8x16xf32>
    tpu.vector_store %arg9[%c0_19, %c0_20], %14 {strides = array<i32>} : memref<8x16xf32, #tpu.memory_space<vmem>>, vector<8x16xf32>,
    return
  }
  func.func @transform_0(%arg0: i32) -> (i32, i32) {
    %c0_i32 = arith.constant 0 : i32
    %c0_i32_0 = arith.constant 0 : i32
    return %arg0, %c0_i32 : i32, i32
  }
  func.func @transform_1(%arg0: i32) -> (i32, i32) {
    %c0_i32 = arith.constant 0 : i32
    %c0_i32_0 = arith.constant 0 : i32
    %c0_i32_1 = arith.constant 0 : i32
    return %c0_i32, %c0_i32_0 : i32, i32
  }
  func.func @transform_2(%arg0: i32) -> (i32, i32) {
    %c0_i32 = arith.constant 0 : i32
    %c0_i32_0 = arith.constant 0 : i32
    %c0_i32_1 = arith.constant 0 : i32
    return %c0_i32, %c0_i32_0 : i32, i32
  }
  func.func @transform_3(%arg0: i32) -> (i32, i32) {
    %c0_i32 = arith.constant 0 : i32
    %c0_i32_0 = arith.constant 0 : i32
    %c0_i32_1 = arith.constant 0 : i32
    return %c0_i32, %c0_i32_0 : i32, i32
  }
  func.func @transform_4(%arg0: i32) -> (i32, i32) {
    %c0_i32 = arith.constant 0 : i32
    %c0_i32_0 = arith.constant 0 : i32
    %c0_i32_1 = arith.constant 0 : i32
    return %c0_i32, %c0_i32_0 : i32, i32
  }
  func.func @transform_5(%arg0: i32) -> (i32, i32) {
    %c0_i32 = arith.constant 0 : i32
    %c0_i32_0 = arith.constant 0 : i32
    return %arg0, %c0_i32 : i32, i32
  }
  func.func @transform_6(%arg0: i32) -> (i32, i32) {
    %c0_i32 = arith.constant 0 : i32
    %c0_i32_0 = arith.constant 0 : i32
    return %arg0, %c0_i32 : i32, i32
  }
  func.func @transform_7(%arg0: i32) -> (i32, i32) {
    %c0_i32 = arith.constant 0 : i32
    %c0_i32_0 = arith.constant 0 : i32
    return %arg0, %c0_i32 : i32, i32
  }
  func.func @transform_8(%arg0: i32) -> (i32, i32) {
    %c0_i32 = arith.constant 0 : i32
    %c0_i32_0 = arith.constant 0 : i32
    return %arg0, %c0_i32 : i32, i32
  }
}

</mosaic_0001>

<llo_original>
// kernel: ca_net_forward.1
$region0: #{ca_net_forward.1}
  #allocation0 [shape = 'u32[]', space=smem, size = 0x4, offset = 0x4, fixed_abs, tag = 'smem constant byte address 0x4 - core index']
  #allocation1 [shape = 'u32[144,128]{1,0:T(1,128)}', space=vmem, size = 0x12000, scoped, tag = 'internal scratch']
  %s0 = inlined_call_operand.vmem [shape: f32[8,32], index: 0, kind: input, shape index: {}]
  %s1 = inlined_call_operand.vmem [shape: f32[32,16], index: 1, kind: input, shape index: {}]
  %s2 = inlined_call_operand.vmem [shape: f32[32,16], index: 2, kind: input, shape index: {}]
  %s3 = inlined_call_operand.vmem [shape: f32[1,16], index: 3, kind: input, shape index: {}]
  %s4 = inlined_call_operand.vmem [shape: f32[1,16], index: 4, kind: input, shape index: {}]
  %s5 = inlined_call_operand.vmem [shape: f32[8,16], index: 5, kind: input, shape index: {}]
  %s6 = inlined_call_operand.vmem [shape: f32[8,16], index: 6, kind: output, shape index: {0}]
  %s7 = inlined_call_operand.vmem [shape: f32[8,16], index: 7, kind: output, shape index: {1}]
  %s8 = inlined_call_operand.vmem [shape: f32[8,16], index: 8, kind: output, shape index: {2}]
  %9 = xla_tuple %s6, %s7, %s8
  %s10 = sld [smem:[#allocation0]]
  $region50: #{ca_net_forward.1} parent=0
    _
  %s12 = ssub.s32 1, %s10
  %s13 = scalar_select 0, %s12, %s10
  // Predicated region
  $region2: #{ca_net_forward.1} parent=0 // pred_check
    _
  $region3: #{ca_net_forward.1} parent=0 // pred_check_branch
    %15 = sbr.rel (0) target = $region5
  $region4: #{ca_net_forward.1} parent=0 // pred_region
    _
  $region5: #{ca_net_forward.1} parent=0 // pred_fallthru
    _
  // Predicated region
  $region6: #{ca_net_forward.1} parent=0 // pred_check
    _
  $region7: #{ca_net_forward.1} parent=0 // pred_check_branch
    %17 = sbr.rel (0) target = $region9
  $region8: #{ca_net_forward.1} parent=0 // pred_region
    _
  $region9: #{ca_net_forward.1} parent=0 // pred_fallthru
    _
  // Predicated region
  $region10: #{ca_net_forward.1} parent=0 // pred_check
    _
  $region11: #{ca_net_forward.1} parent=0 // pred_check_branch
    %19 = sbr.rel (0) target = $region13
  $region12: #{ca_net_forward.1} parent=0 // pred_region
    _
  $region13: #{ca_net_forward.1} parent=0 // pred_fallthru
    _
  // Predicated region
  $region14: #{ca_net_forward.1} parent=0 // pred_check
    _
  $region15: #{ca_net_forward.1} parent=0 // pred_check_branch
    %21 = sbr.rel (0) target = $region17
  $region16: #{ca_net_forward.1} parent=0 // pred_region
    _
  $region17: #{ca_net_forward.1} parent=0 // pred_fallthru
    _
  // Predicated region
  $region18: #{ca_net_forward.1} parent=0 // pred_check
    _
  $region19: #{ca_net_forward.1} parent=0 // pred_check_branch
    %23 = sbr.rel (0) target = $region21
  $region20: #{ca_net_forward.1} parent=0 // pred_region
    _
  $region21: #{ca_net_forward.1} parent=0 // pred_fallthru
    _
  // Predicated region
  $region22: #{ca_net_forward.1} parent=0 // pred_check
    _
  $region23: #{ca_net_forward.1} parent=0 // pred_check_branch
    %25 = sbr.rel (0) target = $region25
  $region24: #{ca_net_forward.1} parent=0 // pred_region
    _
  $region25: #{ca_net_forward.1} parent=0 // pred_fallthru
    _
  %v26 = vld [vmem:[%s0] sm:$0xff]
  %v27 = vld [vmem:[%s1] sm:$0xff]
  %v28 = vld [vmem:[%s1 + $0x8] sm:$0xff]
  %v29 = vld [vmem:[%s1 + $0x10] sm:$0xff]
  %v30 = vld [vmem:[%s1 + $0x18] sm:$0xff]
  %v31 = vld [vmem:[%s3] sm:$0x1]
  %v33 = vlaneseq
  %v34 = vshrl.u32 %v33, 7
  %v35 = vsub.s32 0, %v34
  %v36 = vrot.slane %v31, %v35
  %vm38 = vcmask 261120
  %v40 = vsel %vm38, %v26, 0
  %42 = vmatprep.subr.mxu0 0.0
  %43 = vmatpush1.msra.mxu0 %v27
  %44 = vmatprep.subr.mxu0 0.0
  %45 = vmatpush1.msra.mxu0 %v28
  %46 = vmatprep.subr.mxu0 0.0
  %47 = vmatpush1.msra.mxu0 %v29
  %48 = vmatprep.subr.mxu0 0.0
  %49 = vmatpush1.msra.mxu0 %v30
  %50 = vmatprep.subr.mxu0 0.0
  %51 = vmatpush1.msra.mxu0 0.0
  %52 = vmatprep.subr.mxu0 0.0
  %53 = vmatpush1.msra.mxu0 0.0
  %54 = vmatprep.subr.mxu0 0.0
  %55 = vmatpush1.msra.mxu0 0.0
  %56 = vmatprep.subr.mxu0 0.0
  %57 = vmatpush1.msra.mxu0 0.0
  %58 = vmatprep.subr.mxu0 0.0
  %59 = vmatpush1.msra.mxu0 0.0
  %60 = vmatprep.subr.mxu0 0.0
  %61 = vmatpush1.msra.mxu0 0.0
  %62 = vmatprep.subr.mxu0 0.0
  %63 = vmatpush1.msra.mxu0 0.0
  %64 = vmatprep.subr.mxu0 0.0
  %65 = vmatpush1.msra.mxu0 0.0
  %66 = vmatprep.subr.mxu0 0.0
  %67 = vmatpush1.msra.mxu0 0.0
  %68 = vmatprep.subr.mxu0 0.0
  %69 = vmatpush1.msra.mxu0 0.0
  %70 = vmatprep.subr.mxu0 0.0
  %71 = vmatpush1.msra.mxu0 0.0
  %72 = vmatprep.subr.mxu0 0.0
  %73 = vmatpush1.msra.mxu0 0.0
  %74 = vmatprep.subr.mxu0 0.0
  %75 = vmatpush1.msra.mxu0 0.0
  %76 = vmatprep.subr.mxu0 0.0
  %77 = vmatpush1.msra.mxu0 0.0
  %78 = vmatprep.subr.mxu0 0.0
  %79 = vmatpush1.msra.mxu0 0.0
  %80 = vmatprep.subr.mxu0 0.0
  %81 = vmatpush1.msra.mxu0 0.0
  %82 = vmatprep.subr.mxu0 0.0
  %83 = vmatpush1.msra.mxu0 0.0
  %84 = vmatprep.subr.mxu0 0.0
  %85 = vmatpush1.msra.mxu0 0.0
  %86 = vmatprep.subr.mxu0 0.0
  %87 = vmatpush1.msra.mxu0 0.0
  %88 = vmatprep.subr.mxu0 0.0
  %89 = vmatpush1.msra.mxu0 0.0
  %90 = vmatprep.subr.mxu0 0.0
  %91 = vmatpush1.msra.mxu0 0.0
  %92 = vmatprep.subr.mxu0 0.0
  %93 = vmatpush1.msra.mxu0 0.0
  %94 = vmatprep.subr.mxu0 0.0
  %95 = vmatpush1.msra.mxu0 0.0
  %96 = vmatprep.subr.mxu0 0.0
  %97 = vmatpush1.msra.mxu0 0.0
  %98 = vmatprep.subr.mxu0 0.0
  %99 = vmatpush1.msra.mxu0 0.0
  %100 = vmatprep.subr.mxu0 0.0
  %101 = vmatpush1.msra.mxu0 0.0
  %102 = vmatprep.subr.mxu0 0.0
  %103 = vmatpush1.msra.mxu0 0.0
  %104 = vmatprep.subr.mxu0 0.0
  %105 = vmatpush1.msra.mxu0 0.0
  %106 = vmatprep.mubr.f32.mxu0 0.0
  %107 = vmatmul.mubr.f32.gmra.mrb[0].mxu0 %v40
  %v108 = vpop.f32.mrb[0].mxu0
  %v109 = vadd.f32 %v36, %v108
  %v110 = vpop.f32.mrb[0].mxu0
  %111 = vdwg.mxu0
  %v112 = vld [vmem:[%s2] sm:$0xff]
  %v113 = vld [vmem:[%s2 + $0x8] sm:$0xff]
  %v114 = vld [vmem:[%s2 + $0x10] sm:$0xff]
  %v115 = vld [vmem:[%s2 + $0x18] sm:$0xff]
  %v116 = vld [vmem:[%s4] sm:$0x1]
  %v118 = vlaneseq
  %v119 = vshrl.u32 %v118, 7
  %v120 = vsub.s32 0, %v119
  %v121 = vrot.slane %v116, %v120
  %123 = vmatprep.subr.mxu0 0.0
  %124 = vmatpush1.msra.mxu0 %v112
  %125 = vmatprep.subr.mxu0 0.0
  %126 = vmatpush1.msra.mxu0 %v113
  %127 = vmatprep.subr.mxu0 0.0
  %128 = vmatpush1.msra.mxu0 %v114
  %129 = vmatprep.subr.mxu0 0.0
  %130 = vmatpush1.msra.mxu0 %v115
  %131 = vmatprep.subr.mxu0 0.0
  %132 = vmatpush1.msra.mxu0 0.0
  %133 = vmatprep.subr.mxu0 0.0
  %134 = vmatpush1.msra.mxu0 0.0
  %135 = vmatprep.subr.mxu0 0.0
  %136 = vmatpush1.msra.mxu0 0.0
  %137 = vmatprep.subr.mxu0 0.0
  %138 = vmatpush1.msra.mxu0 0.0
  %139 = vmatprep.subr.mxu0 0.0
  %140 = vmatpush1.msra.mxu0 0.0
  %141 = vmatprep.subr.mxu0 0.0
  %142 = vmatpush1.msra.mxu0 0.0
  %143 = vmatprep.subr.mxu0 0.0
  %144 = vmatpush1.msra.mxu0 0.0
  %145 = vmatprep.subr.mxu0 0.0
  %146 = vmatpush1.msra.mxu0 0.0
  %147 = vmatprep.subr.mxu0 0.0
  %148 = vmatpush1.msra.mxu0 0.0
  %149 = vmatprep.subr.mxu0 0.0
  %150 = vmatpush1.msra.mxu0 0.0
  %151 = vmatprep.subr.mxu0 0.0
  %152 = vmatpush1.msra.mxu0 0.0
  %153 = vmatprep.subr.mxu0 0.0
  %154 = vmatpush1.msra.mxu0 0.0
  %155 = vmatprep.subr.mxu0 0.0
  %156 = vmatpush1.msra.mxu0 0.0
  %157 = vmatprep.subr.mxu0 0.0
  %158 = vmatpush1.msra.mxu0 0.0
  %159 = vmatprep.subr.mxu0 0.0
  %160 = vmatpush1.msra.mxu0 0.0
  %161 = vmatprep.subr.mxu0 0.0
  %162 = vmatpush1.msra.mxu0 0.0
  %163 = vmatprep.subr.mxu0 0.0
  %164 = vmatpush1.msra.mxu0 0.0
  %165 = vmatprep.subr.mxu0 0.0
  %166 = vmatpush1.msra.mxu0 0.0
  %167 = vmatprep.subr.mxu0 0.0
  %168 = vmatpush1.msra.mxu0 0.0
  %169 = vmatprep.subr.mxu0 0.0
  %170 = vmatpush1.msra.mxu0 0.0
  %171 = vmatprep.subr.mxu0 0.0
  %172 = vmatpush1.msra.mxu0 0.0
  %173 = vmatprep.subr.mxu0 0.0
  %174 = vmatpush1.msra.mxu0 0.0
  %175 = vmatprep.subr.mxu0 0.0
  %176 = vmatpush1.msra.mxu0 0.0
  %177 = vmatprep.subr.mxu0 0.0
  %178 = vmatpush1.msra.mxu0 0.0
  %179 = vmatprep.subr.mxu0 0.0
  %180 = vmatpush1.msra.mxu0 0.0
  %181 = vmatprep.subr.mxu0 0.0
  %182 = vmatpush1.msra.mxu0 0.0
  %183 = vmatprep.subr.mxu0 0.0
  %184 = vmatpush1.msra.mxu0 0.0
  %185 = vmatprep.subr.mxu0 0.0
  %186 = vmatpush1.msra.mxu0 0.0
  %187 = vmatprep.mubr.f32.mxu0 0.0
  %188 = vmatmul.mubr.f32.gmra.mrb[0].mxu0 %v40
  %v189 = vpop.f32.mrb[0].mxu0
  %v190 = vadd.f32 %v121, %v189
  %v191 = vpop.f32.mrb[0].mxu0
  %192 = vdwg.mxu0
  %v193 = vmax.f32 %v109, 0.0
  %v194 = vmax.f32 %v190, 0.0
  %v195 = vmul.f32 %v194, 0.5
  %v196 = vmul.f32 %v195, 1.442695
  %v197 = vpow.pop %v196
  %v198 = vld [vmem:[%s5] sm:$0xff]
  %v199 = vmul.f32 %v198, %v197
  %v200 = vadd.f32 %v199, %v193
  %vm201 = vcmask 130048
  %202 = vst.msk [vmem:[%s6] sm:$0xff] %vm201, %v200
  %203 = vst.msk [vmem:[%s7] sm:$0xff] %vm201, %v193
  %204 = vst.msk [vmem:[%s8] sm:$0xff] %vm201, %v194
  // Predicated region
  $region26: #{ca_net_forward.1} parent=0 // pred_check
    _
  $region27: #{ca_net_forward.1} parent=0 // pred_check_branch
    %206 = sbr.rel (0) target = $region29
  $region28: #{ca_net_forward.1} parent=0 // pred_region
    _
  $region29: #{ca_net_forward.1} parent=0 // pred_fallthru
    _
  // Predicated region
  $region30: #{ca_net_forward.1} parent=0 // pred_check
    _
  $region31: #{ca_net_forward.1} parent=0 // pred_check_branch
    %208 = sbr.rel (0) target = $region33
  $region32: #{ca_net_forward.1} parent=0 // pred_region
    _
  $region33: #{ca_net_forward.1} parent=0 // pred_fallthru
    _
  // Predicated region
  $region34: #{ca_net_forward.1} parent=0 // pred_check
    _
  $region35: #{ca_net_forward.1} parent=0 // pred_check_branch
    %210 = sbr.rel (0) target = $region37
  $region36: #{ca_net_forward.1} parent=0 // pred_region
    _
  $region37: #{ca_net_forward.1} parent=0 // pred_fallthru
    _
  // Predicated region
  $region38: #{ca_net_forward.1} parent=0 // pred_check
    _
  $region39: #{ca_net_forward.1} parent=0 // pred_check_branch
    %212 = sbr.rel (0) target = $region41
  $region40: #{ca_net_forward.1} parent=0 // pred_region
    _
  $region41: #{ca_net_forward.1} parent=0 // pred_fallthru
    _
  // Predicated region
  $region42: #{ca_net_forward.1} parent=0 // pred_check
    _
  $region43: #{ca_net_forward.1} parent=0 // pred_check_branch
    %214 = sbr.rel (0) target = $region45
  $region44: #{ca_net_forward.1} parent=0 // pred_region
    _
  $region45: #{ca_net_forward.1} parent=0 // pred_fallthru
    _
  // Predicated region
  $region46: #{ca_net_forward.1} parent=0 // pred_check
    _
  $region47: #{ca_net_forward.1} parent=0 // pred_check_branch
    %216 = sbr.rel (0) target = $region49
  $region48: #{ca_net_forward.1} parent=0 // pred_region
    _
  $region49: #{ca_net_forward.1} parent=0 // pred_fallthru
    _

</llo_original>
